<compile_context>
chip_gen: v7x
topology: tpu7x:2x2x1
jax: 0.10.0
libtpu: 0.0.40
codegen_flags: <defaults>
</compile_context>

<pallas_src>
import functools

import jax
import jax.numpy as jnp
from jax import lax
from jax.experimental import pallas as pl
from jax.experimental.pallas import tpu as pltpu


def rnn_attention_kernel(x_ref, wi_ref, wh_ref, b_ref, wa_ref, ba_ref,
                         wd_ref, bd_ref, out_ref, hn_scr, feat_scr, *,
                         res_depth):
    # x_ref  : (T*B, D)  inputs in flat (t, b) row order (r = t*B + b)
    # wi_ref : (D, H)    i2h.weight^T
    # wh_ref : (H, H)    h2h.weight^T
    # b_ref  : (1, H)    i2h.bias + h2h.bias (fused)
    # wa_ref : (1, H)    att_fc.weight
    # ba_ref : (1, 1)    att_fc.bias
    # wd_ref : (O, T*H)  dense.weight, native lane-dense layout
    # bd_ref : (1, O)    dense.bias
    # out_ref: (B, O)
    # hn_scr : (T*B, H)  staging of hidden states in flat (t, b) order
    # feat_scr: (B, T*H) weighted hiddens regrouped as dense-input rows
    H = wh_ref.shape[0]
    TH = wd_ref.shape[1]
    T = TH // H
    B = out_ref.shape[0]

    wh = wh_ref[...]

    # ---- hoisted input projection: ONE MXU push for all timesteps -----------
    # gx[r, :] = x[r, :] @ W_i2h^T + (b_i2h + b_h2h); kept as a register value.
    gx = jnp.dot(x_ref[...], wi_ref[...],
                 preferred_element_type=jnp.float32) + b_ref[...]

    # ---- ResRNN_Cell recurrence, fully unrolled, values stay in vregs -------
    # h_prev / ht == None encodes the all-zero initial hidden state, letting us
    # skip the h @ W_h2h matmul while h is still exactly zero (PyTorch does not
    # update h0 at i == 0, so steps 0 and 1 see zeros).
    h_prev = None
    ht = None
    hstart = None
    for i in range(T):
        gx_i = gx[i * B:(i + 1) * B, :]                     # (B, H) value slice
        if h_prev is None:
            hn = gx_i
        else:
            hn = gx_i + jnp.dot(h_prev, wh,
                                preferred_element_type=jnp.float32)
        # Static branch structure mirrors ResRNN_Cell.forward exactly
        # (i, T and res_depth are compile-time constants).
        if i == 0:
            hstart = hn
        elif i == T - 2:
            h_prev = jnp.tanh(hn + hstart)
        elif res_depth == 1:
            h_prev = jnp.tanh(hn if h_prev is None else hn + h_prev)
        elif i % res_depth == 0:
            h_prev = jnp.tanh(hn if ht is None else hn + ht)
            ht = hn
        else:
            h_prev = jnp.tanh(hn)
        # Stage hn for the attention/dense phase.  Nothing is loaded back from
        # hn_scr until after the loop, so these stores are off the serial
        # h@Wh + tanh critical path.
        hn_scr[i * B:(i + 1) * B, :] = hn

    # ---- attention (vectorized logits) + 'concate' merge ---------------------
    # PyTorch's .view((B, -1)) of the (T, B, 1) logits makes softmax group g
    # cover flat rows [g*T, (g+1)*T); the later .view(-1, H*T) makes dense
    # input row g the concatenation of the same flat rows.
    hn_all = hn_scr[...]                                    # (T*B, H) one load
    wa = wa_ref[...]                                        # (1, H)
    logits = (jnp.sum(hn_all * wa, axis=1, keepdims=True)
              + ba_ref[...])                                # (T*B, 1) one pass
    for g in range(B):
        lg = logits[g * T:(g + 1) * T, :]                   # (T, 1)
        m = jnp.max(lg, axis=0, keepdims=True)
        e = jnp.exp(lg - m)
        att = e / jnp.sum(e, axis=0, keepdims=True)         # softmax, (T, 1)
        w_g = hn_all[g * T:(g + 1) * T, :] * att            # (T, H) weighted hn
        # Regroup to a lane-dense dense-input row (memory-order identical to
        # PyTorch's .view(-1, H*T)); tiny static stores instead of a risky
        # in-kernel value reshape.
        for k in range(T):
            feat_scr[g:g + 1, k * H:(k + 1) * H] = w_g[k:k + 1, :]

    # ---- single dense matmul: (B, T*H) @ (O, T*H)^T + bias -------------------
    out_ref[...] = (
        lax.dot_general(feat_scr[...], wd_ref[...],
                        dimension_numbers=(((1,), (1,)), ((), ())),
                        preferred_element_type=jnp.float32)
        + bd_ref[...]
    )


def rnn_attention_forward(x, params, *, res_depth):
    """Pallas implementation of RNN_Attention.forward (merge='concate')."""
    # TODO(synk): merge='mean' branch not implemented; the module default
    # ('concate') is what this kernel computes.
    i2h_w, i2h_b, h2h_w, h2h_b, att_w, att_b, dense_w, dense_b = params
    B, T, D = x.shape
    H = h2h_w.shape[0]
    O = dense_w.shape[0]

    # Host-side (free) layout prep: everything the kernel needs, pre-arranged.
    x_flat = jnp.transpose(x, (1, 0, 2)).reshape(T * B, D)   # rows r = t*B + b
    wi = i2h_w.T                                             # (D, H)
    wh = h2h_w.T                                             # (H, H)
    b = (i2h_b + h2h_b).reshape(1, H)                        # fused biases
    wa = att_w.reshape(1, H)
    ba = att_b.reshape(1, 1)
    wd = dense_w                                             # (O, T*H), lane-dense
    bd = dense_b.reshape(1, O)

    # ~20 KB total: keep everything VMEM-resident, no grid / pipelining.
    # If many sequences are batched, add a batch grid with
    # compiler_params=pltpu.CompilerParams(dimension_semantics=("parallel",))
    # to split across v7x's two TensorCores, and size blocks against v7x's
    # 64 MiB VMEM (set vmem_limit_bytes explicitly).
    vmem = pl.BlockSpec(memory_space=pltpu.MemorySpace.VMEM)
    kernel = functools.partial(rnn_attention_kernel, res_depth=res_depth)
    return pl.pallas_call(
        kernel,
        out_shape=jax.ShapeDtypeStruct((B, O), jnp.float32),
        in_specs=[vmem] * 8,
        out_specs=vmem,
        scratch_shapes=[pltpu.VMEM((T * B, H), jnp.float32),
                        pltpu.VMEM((B, T * H), jnp.float32)],
    )(x_flat, wi, wh, b, wa, ba, wd, bd)


def init_params(key, input_dim, hidden_num, output_dim, seq_len):
    """Deterministic init mimicking nn.Linear's U(-1/sqrt(fan_in), 1/sqrt(fan_in))."""
    ks = jax.random.split(key, 8)

    def unif(k, shape, fan_in):
        bound = 1.0 / jnp.sqrt(jnp.float32(fan_in))
        return jax.random.uniform(k, shape, jnp.float32, -bound, bound)

    i2h_w = unif(ks[0], (hidden_num, input_dim), input_dim)
    i2h_b = unif(ks[1], (hidden_num,), input_dim)
    h2h_w = unif(ks[2], (hidden_num, hidden_num), hidden_num)
    h2h_b = unif(ks[3], (hidden_num,), hidden_num)
    att_w = unif(ks[4], (1, hidden_num), hidden_num)
    att_b = unif(ks[5], (1,), hidden_num)
    dense_w = unif(ks[6], (output_dim, hidden_num * seq_len), hidden_num * seq_len)
    dense_b = unif(ks[7], (output_dim,), hidden_num * seq_len)
    return (i2h_w, i2h_b, h2h_w, h2h_b, att_w, att_b, dense_w, dense_b)


def reference_forward(x, params, res_depth):
    """Pure-JAX transliteration of RNN_Attention.forward (merge='concate')."""
    i2h_w, i2h_b, h2h_w, h2h_b, att_w, att_b, dense_w, dense_b = params
    B, lag, _ = x.shape
    H = h2h_w.shape[0]
    h0 = jnp.zeros((1, B, H), jnp.float32)
    ht = h0
    hstart = None
    outputs = []
    for i in range(lag):
        hn = (x[:, i, :] @ i2h_w.T + i2h_b) + (h0 @ h2h_w.T + h2h_b)  # (1,B,H)
        if i == 0:
            hstart = hn
        elif i == lag - 2:
            h0 = jnp.tanh(hn + hstart)
        elif res_depth == 1:
            h0 = jnp.tanh(hn + h0)
        elif i % res_depth == 0:
            h0 = jnp.tanh(hn + ht)
            ht = hn
        else:
            h0 = jnp.tanh(hn)
        outputs.append(hn)
    rnn_out = jnp.concatenate(outputs, axis=0)                  # (lag, B, H)
    att = rnn_out.reshape(-1, H) @ att_w.T + att_b              # (lag*B, 1)
    att = att.reshape(lag, B, 1)                                # TimeDistributed
    att = att.reshape(B, -1)                                    # scrambled view
    att = jax.nn.softmax(att, axis=1)                           # F.softmax dim=1
    att = att.reshape(-1, B, 1)                                 # scrambled view
    weighted = rnn_out * att                                    # (lag, B, H)
    feat = weighted.reshape(-1, H * lag)                        # (B, H*lag)
    return feat @ dense_w.T + dense_b                           # (B, O)


if __name__ == "__main__":
    # RNN_Attention(inputDim=4, hiddenNum=32, outputDim=4, resDepth=2,
    #               seq_len=8, merge='concate')
    B, T, D, H, O = 2, 8, 4, 32, 4
    RES_DEPTH = 2

    key = jax.random.PRNGKey(0)
    k_x, k_p = jax.random.split(key)
    x = jax.random.normal(k_x, (B, T, D), jnp.float32)
    params = init_params(k_p, D, H, O, T)

    fwd = jax.jit(functools.partial(rnn_attention_forward, res_depth=RES_DEPTH))
    out = jax.block_until_ready(fwd(x, params))

    ref = reference_forward(x, params, RES_DEPTH)
    assert out.shape == (B, O)
    assert jnp.allclose(out, ref, atol=1e-4, rtol=1e-4), "mismatch vs reference"

    print("KERNEL_OK")
</pallas_src>

<mosaic_0001>
module attributes {stable_mosaic.version = 11 : i64} {
  func.func @rnn_attention_kernel(%arg0: memref<16x4xf32, #tpu.memory_space<vmem>>, %arg1: memref<4x32xf32, #tpu.memory_space<vmem>>, %arg2: memref<32x32xf32, #tpu.memory_space<vmem>>, %arg3: memref<1x32xf32, #tpu.memory_space<vmem>>, %arg4: memref<1x32xf32, #tpu.memory_space<vmem>>, %arg5: memref<1x1xf32, #tpu.memory_space<vmem>>, %arg6: memref<4x256xf32, #tpu.memory_space<vmem>>, %arg7: memref<1x4xf32, #tpu.memory_space<vmem>>, %arg8: memref<2x4xf32, #tpu.memory_space<vmem>>, %arg9: memref<16x32xf32, #tpu.memory_space<vmem>>, %arg10: memref<2x256xf32, #tpu.memory_space<vmem>>) attributes {dimension_semantics = [], scalar_prefetch = 0 : i64, scratch_operands = 2 : i64, tpu.core_type = #tpu.core_type<tc>} {
    %c0 = arith.constant 0 : index
    %c0_0 = arith.constant 0 : index
    %0 = vector.load %arg2[%c0, %c0_0] : memref<32x32xf32, #tpu.memory_space<vmem>>, vector<32x32xf32>
    %c0_1 = arith.constant 0 : index
    %c0_2 = arith.constant 0 : index
    %1 = vector.load %arg0[%c0_1, %c0_2] : memref<16x4xf32, #tpu.memory_space<vmem>>, vector<16x4xf32>
    %c0_3 = arith.constant 0 : index
    %c0_4 = arith.constant 0 : index
    %2 = vector.load %arg1[%c0_3, %c0_4] : memref<4x32xf32, #tpu.memory_space<vmem>>, vector<4x32xf32>
    %cst = arith.constant dense<0.000000e+00> : vector<16x32xf32>
    %3 = tpu.matmul %1, %2, %cst {dimension_numbers = #tpu.dot_dimension_numbers<[1], [0], [0], [1], [0, 0, 1, 1], [], []>} : vector<16x4xf32>, vector<4x32xf32>, vector<16x32xf32> -> vector<16x32xf32>
    %c0_5 = arith.constant 0 : index
    %c0_6 = arith.constant 0 : index
    %4 = vector.load %arg3[%c0_5, %c0_6] : memref<1x32xf32, #tpu.memory_space<vmem>>, vector<1x32xf32>
    %5 = vector.broadcast %4 : vector<1x32xf32> to vector<16x32xf32>
    %6 = arith.addf %3, %5 : vector<16x32xf32>
    %7 = vector.extract_strided_slice %6 {offsets = [0, 0], sizes = [2, 32], strides = [1, 1]} : vector<16x32xf32> to vector<2x32xf32>
    %c0_7 = arith.constant 0 : index
    %c0_8 = arith.constant 0 : index
    %8 = vector.load %arg9[%c0_7, %c0_8] : memref<16x32xf32, #tpu.memory_space<vmem>>, vector<2x32xf32>
    tpu.vector_store %arg9[%c0_7, %c0_8], %7 {strides = array<i32>} : memref<16x32xf32, #tpu.memory_space<vmem>>, vector<2x32xf32>,
    %9 = vector.extract_strided_slice %6 {offsets = [2, 0], sizes = [2, 32], strides = [1, 1]} : vector<16x32xf32> to vector<2x32xf32>
    %10 = math.tanh %9 : vector<2x32xf32>
    %c2 = arith.constant 2 : index
    %c0_9 = arith.constant 0 : index
    %11 = vector.load %arg9[%c2, %c0_9] : memref<16x32xf32, #tpu.memory_space<vmem>>, vector<2x32xf32>
    tpu.vector_store %arg9[%c2, %c0_9], %9 {strides = array<i32>} : memref<16x32xf32, #tpu.memory_space<vmem>>, vector<2x32xf32>,
    %12 = vector.extract_strided_slice %6 {offsets = [4, 0], sizes = [2, 32], strides = [1, 1]} : vector<16x32xf32> to vector<2x32xf32>
    %cst_10 = arith.constant dense<0.000000e+00> : vector<2x32xf32>
    %13 = tpu.matmul %10, %0, %cst_10 {dimension_numbers = #tpu.dot_dimension_numbers<[1], [0], [0], [1], [0, 0, 1, 1], [], []>} : vector<2x32xf32>, vector<32x32xf32>, vector<2x32xf32> -> vector<2x32xf32>
    %14 = arith.addf %12, %13 : vector<2x32xf32>
    %15 = math.tanh %14 : vector<2x32xf32>
    %c4 = arith.constant 4 : index
    %c0_11 = arith.constant 0 : index
    %16 = vector.load %arg9[%c4, %c0_11] : memref<16x32xf32, #tpu.memory_space<vmem>>, vector<2x32xf32>
    tpu.vector_store %arg9[%c4, %c0_11], %14 {strides = array<i32>} : memref<16x32xf32, #tpu.memory_space<vmem>>, vector<2x32xf32>,
    %17 = vector.extract_strided_slice %6 {offsets = [6, 0], sizes = [2, 32], strides = [1, 1]} : vector<16x32xf32> to vector<2x32xf32>
    %cst_12 = arith.constant dense<0.000000e+00> : vector<2x32xf32>
    %18 = tpu.matmul %15, %0, %cst_12 {dimension_numbers = #tpu.dot_dimension_numbers<[1], [0], [0], [1], [0, 0, 1, 1], [], []>} : vector<2x32xf32>, vector<32x32xf32>, vector<2x32xf32> -> vector<2x32xf32>
    %19 = arith.addf %17, %18 : vector<2x32xf32>
    %20 = math.tanh %19 : vector<2x32xf32>
    %c6 = arith.constant 6 : index
    %c0_13 = arith.constant 0 : index
    %21 = vector.load %arg9[%c6, %c0_13] : memref<16x32xf32, #tpu.memory_space<vmem>>, vector<2x32xf32>
    tpu.vector_store %arg9[%c6, %c0_13], %19 {strides = array<i32>} : memref<16x32xf32, #tpu.memory_space<vmem>>, vector<2x32xf32>,
    %22 = vector.extract_strided_slice %6 {offsets = [8, 0], sizes = [2, 32], strides = [1, 1]} : vector<16x32xf32> to vector<2x32xf32>
    %cst_14 = arith.constant dense<0.000000e+00> : vector<2x32xf32>
    %23 = tpu.matmul %20, %0, %cst_14 {dimension_numbers = #tpu.dot_dimension_numbers<[1], [0], [0], [1], [0, 0, 1, 1], [], []>} : vector<2x32xf32>, vector<32x32xf32>, vector<2x32xf32> -> vector<2x32xf32>
    %24 = arith.addf %22, %23 : vector<2x32xf32>
    %25 = arith.addf %24, %14 : vector<2x32xf32>
    %26 = math.tanh %25 : vector<2x32xf32>
    %c8 = arith.constant 8 : index
    %c0_15 = arith.constant 0 : index
    %27 = vector.load %arg9[%c8, %c0_15] : memref<16x32xf32, #tpu.memory_space<vmem>>, vector<2x32xf32>
    tpu.vector_store %arg9[%c8, %c0_15], %24 {strides = array<i32>} : memref<16x32xf32, #tpu.memory_space<vmem>>, vector<2x32xf32>,
    %28 = vector.extract_strided_slice %6 {offsets = [10, 0], sizes = [2, 32], strides = [1, 1]} : vector<16x32xf32> to vector<2x32xf32>
    %cst_16 = arith.constant dense<0.000000e+00> : vector<2x32xf32>
    %29 = tpu.matmul %26, %0, %cst_16 {dimension_numbers = #tpu.dot_dimension_numbers<[1], [0], [0], [1], [0, 0, 1, 1], [], []>} : vector<2x32xf32>, vector<32x32xf32>, vector<2x32xf32> -> vector<2x32xf32>
    %30 = arith.addf %28, %29 : vector<2x32xf32>
    %31 = math.tanh %30 : vector<2x32xf32>
    %c10 = arith.constant 10 : index
    %c0_17 = arith.constant 0 : index
    %32 = vector.load %arg9[%c10, %c0_17] : memref<16x32xf32, #tpu.memory_space<vmem>>, vector<2x32xf32>
    tpu.vector_store %arg9[%c10, %c0_17], %30 {strides = array<i32>} : memref<16x32xf32, #tpu.memory_space<vmem>>, vector<2x32xf32>,
    %33 = vector.extract_strided_slice %6 {offsets = [12, 0], sizes = [2, 32], strides = [1, 1]} : vector<16x32xf32> to vector<2x32xf32>
    %cst_18 = arith.constant dense<0.000000e+00> : vector<2x32xf32>
    %34 = tpu.matmul %31, %0, %cst_18 {dimension_numbers = #tpu.dot_dimension_numbers<[1], [0], [0], [1], [0, 0, 1, 1], [], []>} : vector<2x32xf32>, vector<32x32xf32>, vector<2x32xf32> -> vector<2x32xf32>
    %35 = arith.addf %33, %34 : vector<2x32xf32>
    %36 = arith.addf %35, %7 : vector<2x32xf32>
    %37 = math.tanh %36 : vector<2x32xf32>
    %c12 = arith.constant 12 : index
    %c0_19 = arith.constant 0 : index
    %38 = vector.load %arg9[%c12, %c0_19] : memref<16x32xf32, #tpu.memory_space<vmem>>, vector<2x32xf32>
    tpu.vector_store %arg9[%c12, %c0_19], %35 {strides = array<i32>} : memref<16x32xf32, #tpu.memory_space<vmem>>, vector<2x32xf32>,
    %39 = vector.extract_strided_slice %6 {offsets = [14, 0], sizes = [2, 32], strides = [1, 1]} : vector<16x32xf32> to vector<2x32xf32>
    %cst_20 = arith.constant dense<0.000000e+00> : vector<2x32xf32>
    %40 = tpu.matmul %37, %0, %cst_20 {dimension_numbers = #tpu.dot_dimension_numbers<[1], [0], [0], [1], [0, 0, 1, 1], [], []>} : vector<2x32xf32>, vector<32x32xf32>, vector<2x32xf32> -> vector<2x32xf32>
    %41 = arith.addf %39, %40 : vector<2x32xf32>
    %c14 = arith.constant 14 : index
    %c0_21 = arith.constant 0 : index
    %42 = vector.load %arg9[%c14, %c0_21] : memref<16x32xf32, #tpu.memory_space<vmem>>, vector<2x32xf32>
    tpu.vector_store %arg9[%c14, %c0_21], %41 {strides = array<i32>} : memref<16x32xf32, #tpu.memory_space<vmem>>, vector<2x32xf32>,
    %c0_22 = arith.constant 0 : index
    %c0_23 = arith.constant 0 : index
    %43 = vector.load %arg9[%c0_22, %c0_23] : memref<16x32xf32, #tpu.memory_space<vmem>>, vector<16x32xf32>
    %c0_24 = arith.constant 0 : index
    %c0_25 = arith.constant 0 : index
    %44 = vector.load %arg4[%c0_24, %c0_25] : memref<1x32xf32, #tpu.memory_space<vmem>>, vector<1x32xf32>
    %45 = vector.broadcast %44 : vector<1x32xf32> to vector<16x32xf32>
    %46 = arith.mulf %43, %45 : vector<16x32xf32>
    %cst_26 = arith.constant dense<0.000000e+00> : vector<16xf32>
    %47 = vector.multi_reduction <add>, %46, %cst_26 [1] : vector<16x32xf32> to vector<16xf32>
    %48 = vector.shape_cast %47 : vector<16xf32> to vector<16x1xf32>
    %c0_27 = arith.constant 0 : index
    %c0_28 = arith.constant 0 : index
    %49 = vector.load %arg5[%c0_27, %c0_28] : memref<1x1xf32, #tpu.memory_space<vmem>>, vector<1x1xf32>
    %50 = vector.broadcast %49 : vector<1x1xf32> to vector<16x1xf32>
    %51 = arith.addf %48, %50 : vector<16x1xf32>
    %52 = vector.extract_strided_slice %51 {offsets = [0, 0], sizes = [8, 1], strides = [1, 1]} : vector<16x1xf32> to vector<8x1xf32>
    %cst_29 = arith.constant dense<0xFF800000> : vector<1xf32>
    %53 = vector.multi_reduction <maximumf>, %52, %cst_29 [0] : vector<8x1xf32> to vector<1xf32>
    %54 = vector.shape_cast %53 : vector<1xf32> to vector<1x1xf32>
    %55 = vector.broadcast %54 : vector<1x1xf32> to vector<8x1xf32>
    %56 = arith.subf %52, %55 : vector<8x1xf32>
    %57 = math.exp %56 : vector<8x1xf32>
    %cst_30 = arith.constant dense<0.000000e+00> : vector<1xf32>
    %58 = vector.multi_reduction <add>, %57, %cst_30 [0] : vector<8x1xf32> to vector<1xf32>
    %59 = vector.shape_cast %58 : vector<1xf32> to vector<1x1xf32>
    %60 = vector.broadcast %59 : vector<1x1xf32> to vector<8x1xf32>
    %61 = arith.divf %57, %60 : vector<8x1xf32>
    %62 = vector.extract_strided_slice %43 {offsets = [0, 0], sizes = [8, 32], strides = [1, 1]} : vector<16x32xf32> to vector<8x32xf32>
    %63 = vector.broadcast %61 : vector<8x1xf32> to vector<8x32xf32>
    %64 = arith.mulf %62, %63 : vector<8x32xf32>
    %65 = vector.extract_strided_slice %64 {offsets = [0, 0], sizes = [1, 32], strides = [1, 1]} : vector<8x32xf32> to vector<1x32xf32>
    %c0_31 = arith.constant 0 : index
    %c0_32 = arith.constant 0 : index
    %66 = vector.load %arg10[%c0_31, %c0_32] : memref<2x256xf32, #tpu.memory_space<vmem>>, vector<1x32xf32>
    tpu.vector_store %arg10[%c0_31, %c0_32], %65 {strides = array<i32>} : memref<2x256xf32, #tpu.memory_space<vmem>>, vector<1x32xf32>,
    %67 = vector.extract_strided_slice %64 {offsets = [1, 0], sizes = [1, 32], strides = [1, 1]} : vector<8x32xf32> to vector<1x32xf32>
    %c0_33 = arith.constant 0 : index
    %c32 = arith.constant 32 : index
    %68 = vector.load %arg10[%c0_33, %c32] : memref<2x256xf32, #tpu.memory_space<vmem>>, vector<1x32xf32>
    tpu.vector_store %arg10[%c0_33, %c32], %67 {strides = array<i32>} : memref<2x256xf32, #tpu.memory_space<vmem>>, vector<1x32xf32>,
    %69 = vector.extract_strided_slice %64 {offsets = [2, 0], sizes = [1, 32], strides = [1, 1]} : vector<8x32xf32> to vector<1x32xf32>
    %c0_34 = arith.constant 0 : index
    %c64 = arith.constant 64 : index
    %70 = vector.load %arg10[%c0_34, %c64] : memref<2x256xf32, #tpu.memory_space<vmem>>, vector<1x32xf32>
    tpu.vector_store %arg10[%c0_34, %c64], %69 {strides = array<i32>} : memref<2x256xf32, #tpu.memory_space<vmem>>, vector<1x32xf32>,
    %71 = vector.extract_strided_slice %64 {offsets = [3, 0], sizes = [1, 32], strides = [1, 1]} : vector<8x32xf32> to vector<1x32xf32>
    %c0_35 = arith.constant 0 : index
    %c96 = arith.constant 96 : index
    %72 = vector.load %arg10[%c0_35, %c96] : memref<2x256xf32, #tpu.memory_space<vmem>>, vector<1x32xf32>
    tpu.vector_store %arg10[%c0_35, %c96], %71 {strides = array<i32>} : memref<2x256xf32, #tpu.memory_space<vmem>>, vector<1x32xf32>,
    %73 = vector.extract_strided_slice %64 {offsets = [4, 0], sizes = [1, 32], strides = [1, 1]} : vector<8x32xf32> to vector<1x32xf32>
    %c0_36 = arith.constant 0 : index
    %c128 = arith.constant 128 : index
    %74 = vector.load %arg10[%c0_36, %c128] : memref<2x256xf32, #tpu.memory_space<vmem>>, vector<1x32xf32>
    tpu.vector_store %arg10[%c0_36, %c128], %73 {strides = array<i32>} : memref<2x256xf32, #tpu.memory_space<vmem>>, vector<1x32xf32>,
    %75 = vector.extract_strided_slice %64 {offsets = [5, 0], sizes = [1, 32], strides = [1, 1]} : vector<8x32xf32> to vector<1x32xf32>
    %c0_37 = arith.constant 0 : index
    %c160 = arith.constant 160 : index
    %76 = vector.load %arg10[%c0_37, %c160] : memref<2x256xf32, #tpu.memory_space<vmem>>, vector<1x32xf32>
    tpu.vector_store %arg10[%c0_37, %c160], %75 {strides = array<i32>} : memref<2x256xf32, #tpu.memory_space<vmem>>, vector<1x32xf32>,
    %77 = vector.extract_strided_slice %64 {offsets = [6, 0], sizes = [1, 32], strides = [1, 1]} : vector<8x32xf32> to vector<1x32xf32>
    %c0_38 = arith.constant 0 : index
    %c192 = arith.constant 192 : index
    %78 = vector.load %arg10[%c0_38, %c192] : memref<2x256xf32, #tpu.memory_space<vmem>>, vector<1x32xf32>
    tpu.vector_store %arg10[%c0_38, %c192], %77 {strides = array<i32>} : memref<2x256xf32, #tpu.memory_space<vmem>>, vector<1x32xf32>,
    %79 = vector.extract_strided_slice %64 {offsets = [7, 0], sizes = [1, 32], strides = [1, 1]} : vector<8x32xf32> to vector<1x32xf32>
    %c0_39 = arith.constant 0 : index
    %c224 = arith.constant 224 : index
    %80 = vector.load %arg10[%c0_39, %c224] : memref<2x256xf32, #tpu.memory_space<vmem>>, vector<1x32xf32>
    tpu.vector_store %arg10[%c0_39, %c224], %79 {strides = array<i32>} : memref<2x256xf32, #tpu.memory_space<vmem>>, vector<1x32xf32>,
    %81 = vector.extract_strided_slice %51 {offsets = [8, 0], sizes = [8, 1], strides = [1, 1]} : vector<16x1xf32> to vector<8x1xf32>
    %cst_40 = arith.constant dense<0xFF800000> : vector<1xf32>
    %82 = vector.multi_reduction <maximumf>, %81, %cst_40 [0] : vector<8x1xf32> to vector<1xf32>
    %83 = vector.shape_cast %82 : vector<1xf32> to vector<1x1xf32>
    %84 = vector.broadcast %83 : vector<1x1xf32> to vector<8x1xf32>
    %85 = arith.subf %81, %84 : vector<8x1xf32>
    %86 = math.exp %85 : vector<8x1xf32>
    %cst_41 = arith.constant dense<0.000000e+00> : vector<1xf32>
    %87 = vector.multi_reduction <add>, %86, %cst_41 [0] : vector<8x1xf32> to vector<1xf32>
    %88 = vector.shape_cast %87 : vector<1xf32> to vector<1x1xf32>
    %89 = vector.broadcast %88 : vector<1x1xf32> to vector<8x1xf32>
    %90 = arith.divf %86, %89 : vector<8x1xf32>
    %91 = vector.extract_strided_slice %43 {offsets = [8, 0], sizes = [8, 32], strides = [1, 1]} : vector<16x32xf32> to vector<8x32xf32>
    %92 = vector.broadcast %90 : vector<8x1xf32> to vector<8x32xf32>
    %93 = arith.mulf %91, %92 : vector<8x32xf32>
    %94 = vector.extract_strided_slice %93 {offsets = [0, 0], sizes = [1, 32], strides = [1, 1]} : vector<8x32xf32> to vector<1x32xf32>
    %c1 = arith.constant 1 : index
    %c0_42 = arith.constant 0 : index
    %95 = vector.load %arg10[%c1, %c0_42] : memref<2x256xf32, #tpu.memory_space<vmem>>, vector<1x32xf32>
    tpu.vector_store %arg10[%c1, %c0_42], %94 {strides = array<i32>} : memref<2x256xf32, #tpu.memory_space<vmem>>, vector<1x32xf32>,
    %96 = vector.extract_strided_slice %93 {offsets = [1, 0], sizes = [1, 32], strides = [1, 1]} : vector<8x32xf32> to vector<1x32xf32>
    %c1_43 = arith.constant 1 : index
    %c32_44 = arith.constant 32 : index
    %97 = vector.load %arg10[%c1_43, %c32_44] : memref<2x256xf32, #tpu.memory_space<vmem>>, vector<1x32xf32>
    tpu.vector_store %arg10[%c1_43, %c32_44], %96 {strides = array<i32>} : memref<2x256xf32, #tpu.memory_space<vmem>>, vector<1x32xf32>,
    %98 = vector.extract_strided_slice %93 {offsets = [2, 0], sizes = [1, 32], strides = [1, 1]} : vector<8x32xf32> to vector<1x32xf32>
    %c1_45 = arith.constant 1 : index
    %c64_46 = arith.constant 64 : index
    %99 = vector.load %arg10[%c1_45, %c64_46] : memref<2x256xf32, #tpu.memory_space<vmem>>, vector<1x32xf32>
    tpu.vector_store %arg10[%c1_45, %c64_46], %98 {strides = array<i32>} : memref<2x256xf32, #tpu.memory_space<vmem>>, vector<1x32xf32>,
    %100 = vector.extract_strided_slice %93 {offsets = [3, 0], sizes = [1, 32], strides = [1, 1]} : vector<8x32xf32> to vector<1x32xf32>
    %c1_47 = arith.constant 1 : index
    %c96_48 = arith.constant 96 : index
    %101 = vector.load %arg10[%c1_47, %c96_48] : memref<2x256xf32, #tpu.memory_space<vmem>>, vector<1x32xf32>
    tpu.vector_store %arg10[%c1_47, %c96_48], %100 {strides = array<i32>} : memref<2x256xf32, #tpu.memory_space<vmem>>, vector<1x32xf32>,
    %102 = vector.extract_strided_slice %93 {offsets = [4, 0], sizes = [1, 32], strides = [1, 1]} : vector<8x32xf32> to vector<1x32xf32>
    %c1_49 = arith.constant 1 : index
    %c128_50 = arith.constant 128 : index
    %103 = vector.load %arg10[%c1_49, %c128_50] : memref<2x256xf32, #tpu.memory_space<vmem>>, vector<1x32xf32>
    tpu.vector_store %arg10[%c1_49, %c128_50], %102 {strides = array<i32>} : memref<2x256xf32, #tpu.memory_space<vmem>>, vector<1x32xf32>,
    %104 = vector.extract_strided_slice %93 {offsets = [5, 0], sizes = [1, 32], strides = [1, 1]} : vector<8x32xf32> to vector<1x32xf32>
    %c1_51 = arith.constant 1 : index
    %c160_52 = arith.constant 160 : index
    %105 = vector.load %arg10[%c1_51, %c160_52] : memref<2x256xf32, #tpu.memory_space<vmem>>, vector<1x32xf32>
    tpu.vector_store %arg10[%c1_51, %c160_52], %104 {strides = array<i32>} : memref<2x256xf32, #tpu.memory_space<vmem>>, vector<1x32xf32>,
    %106 = vector.extract_strided_slice %93 {offsets = [6, 0], sizes = [1, 32], strides = [1, 1]} : vector<8x32xf32> to vector<1x32xf32>
    %c1_53 = arith.constant 1 : index
    %c192_54 = arith.constant 192 : index
    %107 = vector.load %arg10[%c1_53, %c192_54] : memref<2x256xf32, #tpu.memory_space<vmem>>, vector<1x32xf32>
    tpu.vector_store %arg10[%c1_53, %c192_54], %106 {strides = array<i32>} : memref<2x256xf32, #tpu.memory_space<vmem>>, vector<1x32xf32>,
    %108 = vector.extract_strided_slice %93 {offsets = [7, 0], sizes = [1, 32], strides = [1, 1]} : vector<8x32xf32> to vector<1x32xf32>
    %c1_55 = arith.constant 1 : index
    %c224_56 = arith.constant 224 : index
    %109 = vector.load %arg10[%c1_55, %c224_56] : memref<2x256xf32, #tpu.memory_space<vmem>>, vector<1x32xf32>
    tpu.vector_store %arg10[%c1_55, %c224_56], %108 {strides = array<i32>} : memref<2x256xf32, #tpu.memory_space<vmem>>, vector<1x32xf32>,
    %c0_57 = arith.constant 0 : index
    %c0_58 = arith.constant 0 : index
    %110 = vector.load %arg10[%c0_57, %c0_58] : memref<2x256xf32, #tpu.memory_space<vmem>>, vector<2x256xf32>
    %c0_59 = arith.constant 0 : index
    %c0_60 = arith.constant 0 : index
    %111 = vector.load %arg6[%c0_59, %c0_60] : memref<4x256xf32, #tpu.memory_space<vmem>>, vector<4x256xf32>
    %cst_61 = arith.constant dense<0.000000e+00> : vector<2x4xf32>
    %112 = tpu.matmul %110, %111, %cst_61 {dimension_numbers = #tpu.dot_dimension_numbers<[1], [1], [0], [0], [0, 0, 1, 0], [], []>} : vector<2x256xf32>, vector<4x256xf32>, vector<2x4xf32> -> vector<2x4xf32>
    %c0_62 = arith.constant 0 : index
    %c0_63 = arith.constant 0 : index
    %113 = vector.load %arg7[%c0_62, %c0_63] : memref<1x4xf32, #tpu.memory_space<vmem>>, vector<1x4xf32>
    %114 = vector.broadcast %113 : vector<1x4xf32> to vector<2x4xf32>
    %115 = arith.addf %112, %114 : vector<2x4xf32>
    %c0_64 = arith.constant 0 : index
    %c0_65 = arith.constant 0 : index
    %116 = vector.load %arg8[%c0_64, %c0_65] : memref<2x4xf32, #tpu.memory_space<vmem>>, vector<2x4xf32>
    tpu.vector_store %arg8[%c0_64, %c0_65], %115 {strides = array<i32>} : memref<2x4xf32, #tpu.memory_space<vmem>>, vector<2x4xf32>,
    return
  }
}

</mosaic_0001>

<llo_original>
// kernel: rnn_attention_forward.1
$region0: #{rnn_attention_forward.1}
  #allocation0 [shape = 'u32[]', space=smem, size = 0x4, offset = 0x4, fixed_abs, tag = 'smem constant byte address 0x4 - core index']
  #allocation1 [shape = 'u32[144,128]{1,0:T(1,128)}', space=vmem, size = 0x12000, scoped, tag = 'internal scratch']
  #allocation2 [shape = 'f32[16,32]{1,0:T(8,128)}', space=vmem, size = 0x2000, scoped, tag = 'scratch operand']
  #allocation3 [shape = 'f32[2,256]{1,0:T(2,128)}', space=vmem, size = 0x800, scoped, tag = 'scratch operand']
  #allocation4 [shape = 'f32[1,1]{1,0:T(1,128)S(1)}', space=vmem, size = 0x200, scoped, tag = 'scoped memory for rnn_attention_forward.1']
  %s0 = inlined_call_operand.vmem [shape: f32[16,4], index: 0, kind: input, shape index: {}]
  %s1 = inlined_call_operand.vmem [shape: f32[4,32], index: 1, kind: input, shape index: {}]
  %s2 = inlined_call_operand.vmem [shape: f32[32,32], index: 2, kind: input, shape index: {}]
  %s3 = inlined_call_operand.vmem [shape: f32[1,32], index: 3, kind: input, shape index: {}]
  %s4 = inlined_call_operand.vmem [shape: f32[1,32], index: 4, kind: input, shape index: {}]
  %s5 = inlined_call_operand.<no memory space> [shape: f32[1,1], index: 5, kind: input, shape index: {}]
  %s6 = inlined_call_operand.vmem [shape: f32[4,256], index: 6, kind: input, shape index: {}]
  %s7 = inlined_call_operand.vmem [shape: f32[1,4], index: 7, kind: input, shape index: {}]
  %s8 = inlined_call_operand.hbm [shape: f32[2,4], index: 8, kind: output, shape index: {}]
  %s9 = sld [smem:[#allocation0]]
  $region42: #{rnn_attention_forward.1} parent=0
    _
  %s11 = ssub.s32 1, %s9
  %s12 = scalar_select 0, %s11, %s9
  %v13 = vstv %s5
  %14 = vst [vmem:[#allocation4] sm:$0x1] %v13
  $region1: #{rnn_attention_forward.1} parent=0
    #allocation5 [shape = 'u8[1024]{0}', space=vmem, size = 0x400, scoped, tag = 'output window, operand 0, single buffered']
    #allocation6 [shape = 's32[1]{0}', space=sflag, size = 0x4, scoped, tag = 'scoped memory for rnn_attention_forward.1']
    %15 = vsyncpa [#allocation6], 0
    // Predicated region
    $region2: #{rnn_attention_forward.1} parent=1 // pred_check
      _
    $region3: #{rnn_attention_forward.1} parent=1 // pred_check_branch
      %17 = sbr.rel (0) target = $region5
    $region4: #{rnn_attention_forward.1} parent=1 // pred_region
      _
    $region5: #{rnn_attention_forward.1} parent=1 // pred_fallthru
      _
    // Predicated region
    $region6: #{rnn_attention_forward.1} parent=1 // pred_check
      _
    $region7: #{rnn_attention_forward.1} parent=1 // pred_check_branch
      %19 = sbr.rel (0) target = $region9
    $region8: #{rnn_attention_forward.1} parent=1 // pred_region
      _
    $region9: #{rnn_attention_forward.1} parent=1 // pred_fallthru
      _
    // Predicated region
    $region10: #{rnn_attention_forward.1} parent=1 // pred_check
      _
    $region11: #{rnn_attention_forward.1} parent=1 // pred_check_branch
      %21 = sbr.rel (0) target = $region13
    $region12: #{rnn_attention_forward.1} parent=1 // pred_region
      _
    $region13: #{rnn_attention_forward.1} parent=1 // pred_fallthru
      _
    // Predicated region
    $region14: #{rnn_attention_forward.1} parent=1 // pred_check
      _
    $region15: #{rnn_attention_forward.1} parent=1 // pred_check_branch
      %23 = sbr.rel (0) target = $region17
    $region16: #{rnn_attention_forward.1} parent=1 // pred_region
      _
    $region17: #{rnn_attention_forward.1} parent=1 // pred_fallthru
      _
    // Predicated region
    $region18: #{rnn_attention_forward.1} parent=1 // pred_check
      _
    $region19: #{rnn_attention_forward.1} parent=1 // pred_check_branch
      %25 = sbr.rel (0) target = $region21
    $region20: #{rnn_attention_forward.1} parent=1 // pred_region
      _
    $region21: #{rnn_attention_forward.1} parent=1 // pred_fallthru
      _
    // Predicated region
    $region22: #{rnn_attention_forward.1} parent=1 // pred_check
      _
    $region23: #{rnn_attention_forward.1} parent=1 // pred_check_branch
      %27 = sbr.rel (0) target = $region25
    $region24: #{rnn_attention_forward.1} parent=1 // pred_region
      _
    $region25: #{rnn_attention_forward.1} parent=1 // pred_fallthru
      _
    // Predicated region
    $region26: #{rnn_attention_forward.1} parent=1 // pred_check
      _
    $region27: #{rnn_attention_forward.1} parent=1 // pred_check_branch
      %29 = sbr.rel (0) target = $region29
    $region28: #{rnn_attention_forward.1} parent=1 // pred_region
      _
    $region29: #{rnn_attention_forward.1} parent=1 // pred_fallthru
      _
    // Predicated region
    $region30: #{rnn_attention_forward.1} parent=1 // pred_check
      _
    $region31: #{rnn_attention_forward.1} parent=1 // pred_check_branch
      %31 = sbr.rel (0) target = $region33
    $region32: #{rnn_attention_forward.1} parent=1 // pred_region
      _
    $region33: #{rnn_attention_forward.1} parent=1 // pred_fallthru
      _
    %v32 = vld [vmem:[%s2] sm:$0xff]
    %v33 = vld [vmem:[%s2 + $0x8] sm:$0xff]
    %v34 = vld [vmem:[%s2 + $0x10] sm:$0xff]
    %v35 = vld [vmem:[%s2 + $0x18] sm:$0xff]
    %v36 = vld [vmem:[%s0] sm:$0xff]
    %v37 = vld [vmem:[%s0 + $0x8] sm:$0xff]
    %v38 = vld [vmem:[%s1] sm:$0xf]
    %v39 = vld [vmem:[%s3] sm:$0x1]
    %v41 = vlaneseq
    %v42 = vshrl.u32 %v41, 7
    %v43 = vsub.s32 0, %v42
    %v44 = vrot.slane %v39, %v43
    %vm46 = vcmask 31744
    %v48 = vsel %vm46, %v36, 0
    %v51 = vsel %vm46, %v37, 0
    %vm53 = vcmask 1043456
    %v55 = vsel %vm53, %v38, 0
    %57 = vmatprep.subr.mxu0 0.0
    %58 = vmatpush1.msra.mxu0 %v55
    %59 = vmatprep.subr.mxu0 0.0
    %60 = vmatpush1.msra.mxu0 0.0
    %61 = vmatprep.subr.mxu0 0.0
    %62 = vmatpush1.msra.mxu0 0.0
    %63 = vmatprep.subr.mxu0 0.0
    %64 = vmatpush1.msra.mxu0 0.0
    %65 = vmatprep.subr.mxu0 0.0
    %66 = vmatpush1.msra.mxu0 0.0
    %67 = vmatprep.subr.mxu0 0.0
    %68 = vmatpush1.msra.mxu0 0.0
    %69 = vmatprep.subr.mxu0 0.0
    %70 = vmatpush1.msra.mxu0 0.0
    %71 = vmatprep.subr.mxu0 0.0
    %72 = vmatpush1.msra.mxu0 0.0
    %73 = vmatprep.subr.mxu0 0.0
    %74 = vmatpush1.msra.mxu0 0.0
    %75 = vmatprep.subr.mxu0 0.0
    %76 = vmatpush1.msra.mxu0 0.0
    %77 = vmatprep.subr.mxu0 0.0
    %78 = vmatpush1.msra.mxu0 0.0
    %79 = vmatprep.subr.mxu0 0.0
    %80 = vmatpush1.msra.mxu0 0.0
    %81 = vmatprep.subr.mxu0 0.0
    %82 = vmatpush1.msra.mxu0 0.0
    %83 = vmatprep.subr.mxu0 0.0
    %84 = vmatpush1.msra.mxu0 0.0
    %85 = vmatprep.subr.mxu0 0.0
    %86 = vmatpush1.msra.mxu0 0.0
    %87 = vmatprep.subr.mxu0 0.0
    %88 = vmatpush1.msra.mxu0 0.0
    %89 = vmatprep.subr.mxu0 0.0
    %90 = vmatpush1.msra.mxu0 0.0
    %91 = vmatprep.subr.mxu0 0.0
    %92 = vmatpush1.msra.mxu0 0.0
    %93 = vmatprep.subr.mxu0 0.0
    %94 = vmatpush1.msra.mxu0 0.0
    %95 = vmatprep.subr.mxu0 0.0
    %96 = vmatpush1.msra.mxu0 0.0
    %97 = vmatprep.subr.mxu0 0.0
    %98 = vmatpush1.msra.mxu0 0.0
    %99 = vmatprep.subr.mxu0 0.0
    %100 = vmatpush1.msra.mxu0 0.0
    %101 = vmatprep.subr.mxu0 0.0
    %102 = vmatpush1.msra.mxu0 0.0
    %103 = vmatprep.subr.mxu0 0.0
    %104 = vmatpush1.msra.mxu0 0.0
    %105 = vmatprep.subr.mxu0 0.0
    %106 = vmatpush1.msra.mxu0 0.0
    %107 = vmatprep.subr.mxu0 0.0
    %108 = vmatpush1.msra.mxu0 0.0
    %109 = vmatprep.subr.mxu0 0.0
    %110 = vmatpush1.msra.mxu0 0.0
    %111 = vmatprep.subr.mxu0 0.0
    %112 = vmatpush1.msra.mxu0 0.0
    %113 = vmatprep.subr.mxu0 0.0
    %114 = vmatpush1.msra.mxu0 0.0
    %115 = vmatprep.subr.mxu0 0.0
    %116 = vmatpush1.msra.mxu0 0.0
    %117 = vmatprep.subr.mxu0 0.0
    %118 = vmatpush1.msra.mxu0 0.0
    %119 = vmatprep.subr.mxu0 0.0
    %120 = vmatpush1.msra.mxu0 0.0
    %121 = vmatprep.mubr.f32.mxu0 0.0
    %122 = vmatmul.mubr.f32.gmra.mrb[0].mxu0 %v48
    %v123 = vpop.f32.mrb[0].mxu0
    %v124 = vadd.f32 %v44, %v123
    %v125 = vpop.f32.mrb[0].mxu0
    %126 = vmatprep.mubr.f32.mxu0 0.0
    %127 = vmatmul.mubr.f32.gmra.mrb[0].mxu0 %v51
    %v128 = vpop.f32.mrb[0].mxu0
    %v129 = vadd.f32 %v44, %v128
    %v130 = vpop.f32.mrb[0].mxu0
    %131 = vdwg.mxu0
    %vm132 = vcmask 254976
    %133 = vst.msk [vmem:[#allocation2] sm:$0x3] %vm132, %v124
    %v134 = vtanh.pop %v124
    %vm135 = vcmask 257026
    %136 = vst.msk [vmem:[#allocation2] sm:$0xc] %vm135, %v124
    %v138 = vrot.slane %v134, 2
    %vm139 = vcmask 261120
    %v140 = vsel %vm139, %v138, 0
    %142 = vmatprep.subr.mxu0 0.0
    %143 = vmatpush1.msra.mxu0 %v32
    %144 = vmatprep.subr.mxu0 0.0
    %145 = vmatpush1.msra.mxu0 %v33
    %146 = vmatprep.subr.mxu0 0.0
    %147 = vmatpush1.msra.mxu0 %v34
    %148 = vmatprep.subr.mxu0 0.0
    %149 = vmatpush1.msra.mxu0 %v35
    %150 = vmatprep.subr.mxu0 0.0
    %151 = vmatpush1.msra.mxu0 0.0
    %152 = vmatprep.subr.mxu0 0.0
    %153 = vmatpush1.msra.mxu0 0.0
    %154 = vmatprep.subr.mxu0 0.0
    %155 = vmatpush1.msra.mxu0 0.0
    %156 = vmatprep.subr.mxu0 0.0
    %157 = vmatpush1.msra.mxu0 0.0
    %158 = vmatprep.subr.mxu0 0.0
    %159 = vmatpush1.msra.mxu0 0.0
    %160 = vmatprep.subr.mxu0 0.0
    %161 = vmatpush1.msra.mxu0 0.0
    %162 = vmatprep.subr.mxu0 0.0
    %163 = vmatpush1.msra.mxu0 0.0
    %164 = vmatprep.subr.mxu0 0.0
    %165 = vmatpush1.msra.mxu0 0.0
    %166 = vmatprep.subr.mxu0 0.0
    %167 = vmatpush1.msra.mxu0 0.0
    %168 = vmatprep.subr.mxu0 0.0
    %169 = vmatpush1.msra.mxu0 0.0
    %170 = vmatprep.subr.mxu0 0.0
    %171 = vmatpush1.msra.mxu0 0.0
    %172 = vmatprep.subr.mxu0 0.0
    %173 = vmatpush1.msra.mxu0 0.0
    %174 = vmatprep.subr.mxu0 0.0
    %175 = vmatpush1.msra.mxu0 0.0
    %176 = vmatprep.subr.mxu0 0.0
    %177 = vmatpush1.msra.mxu0 0.0
    %178 = vmatprep.subr.mxu0 0.0
    %179 = vmatpush1.msra.mxu0 0.0
    %180 = vmatprep.subr.mxu0 0.0
    %181 = vmatpush1.msra.mxu0 0.0
    %182 = vmatprep.subr.mxu0 0.0
    %183 = vmatpush1.msra.mxu0 0.0
    %184 = vmatprep.subr.mxu0 0.0
    %185 = vmatpush1.msra.mxu0 0.0
    %186 = vmatprep.subr.mxu0 0.0
    %187 = vmatpush1.msra.mxu0 0.0
    %188 = vmatprep.subr.mxu0 0.0
    %189 = vmatpush1.msra.mxu0 0.0
    %190 = vmatprep.subr.mxu0 0.0
    %191 = vmatpush1.msra.mxu0 0.0
    %192 = vmatprep.subr.mxu0 0.0
    %193 = vmatpush1.msra.mxu0 0.0
    %194 = vmatprep.subr.mxu0 0.0
    %195 = vmatpush1.msra.mxu0 0.0
    %196 = vmatprep.subr.mxu0 0.0
    %197 = vmatpush1.msra.mxu0 0.0
    %198 = vmatprep.subr.mxu0 0.0
    %199 = vmatpush1.msra.mxu0 0.0
    %200 = vmatprep.subr.mxu0 0.0
    %201 = vmatpush1.msra.mxu0 0.0
    %202 = vmatprep.subr.mxu0 0.0
    %203 = vmatpush1.msra.mxu0 0.0
    %204 = vmatprep.subr.mxu0 0.0
    %205 = vmatpush1.msra.mxu0 0.0
    %206 = vmatprep.mubr.f32.mxu0 0.0
    %207 = vmatmul.mubr.f32.gmra.mrb[0].mxu0 %v140
    %v208 = vpop.f32.mrb[0].mxu0
    %v209 = vadd.f32 0.0, %v208
    %v210 = vpop.f32.mrb[0].mxu0
    %211 = vdwg.mxu0
    %v213 = vrot.slane %v209, 4
    %v215 = vadd.f32 %v124, %v213
    %v216 = vtanh.pop %v215
    %vm217 = vcmask 259076
    %218 = vst.msk [vmem:[#allocation2] sm:$0x30] %vm217, %v215
    %v220 = vrot.slane %v216, 4
    %v221 = vsel %vm139, %v220, 0
    %223 = vmatprep.subr.mxu0 0.0
    %224 = vmatpush1.msra.mxu0 %v32
    %225 = vmatprep.subr.mxu0 0.0
    %226 = vmatpush1.msra.mxu0 %v33
    %227 = vmatprep.subr.mxu0 0.0
    %228 = vmatpush1.msra.mxu0 %v34
    %229 = vmatprep.subr.mxu0 0.0
    %230 = vmatpush1.msra.mxu0 %v35
    %231 = vmatprep.subr.mxu0 0.0
    %232 = vmatpush1.msra.mxu0 0.0
    %233 = vmatprep.subr.mxu0 0.0
    %234 = vmatpush1.msra.mxu0 0.0
    %235 = vmatprep.subr.mxu0 0.0
    %236 = vmatpush1.msra.mxu0 0.0
    %237 = vmatprep.subr.mxu0 0.0
    %238 = vmatpush1.msra.mxu0 0.0
    %239 = vmatprep.subr.mxu0 0.0
    %240 = vmatpush1.msra.mxu0 0.0
    %241 = vmatprep.subr.mxu0 0.0
    %242 = vmatpush1.msra.mxu0 0.0
    %243 = vmatprep.subr.mxu0 0.0
    %244 = vmatpush1.msra.mxu0 0.0
    %245 = vmatprep.subr.mxu0 0.0
    %246 = vmatpush1.msra.mxu0 0.0
    %247 = vmatprep.subr.mxu0 0.0
    %248 = vmatpush1.msra.mxu0 0.0
    %249 = vmatprep.subr.mxu0 0.0
    %250 = vmatpush1.msra.mxu0 0.0
    %251 = vmatprep.subr.mxu0 0.0
    %252 = vmatpush1.msra.mxu0 0.0
    %253 = vmatprep.subr.mxu0 0.0
    %254 = vmatpush1.msra.mxu0 0.0
    %255 = vmatprep.subr.mxu0 0.0
    %256 = vmatpush1.msra.mxu0 0.0
    %257 = vmatprep.subr.mxu0 0.0
    %258 = vmatpush1.msra.mxu0 0.0
    %259 = vmatprep.subr.mxu0 0.0
    %260 = vmatpush1.msra.mxu0 0.0
    %261 = vmatprep.subr.mxu0 0.0
    %262 = vmatpush1.msra.mxu0 0.0
    %263 = vmatprep.subr.mxu0 0.0
    %264 = vmatpush1.msra.mxu0 0.0
    %265 = vmatprep.subr.mxu0 0.0
    %266 = vmatpush1.msra.mxu0 0.0
    %267 = vmatprep.subr.mxu0 0.0
    %268 = vmatpush1.msra.mxu0 0.0
    %269 = vmatprep.subr.mxu0 0.0
    %270 = vmatpush1.msra.mxu0 0.0
    %271 = vmatprep.subr.mxu0 0.0
    %272 = vmatpush1.msra.mxu0 0.0
    %273 = vmatprep.subr.mxu0 0.0
    %274 = vmatpush1.msra.mxu0 0.0
    %275 = vmatprep.subr.mxu0 0.0
    %276 = vmatpush1.msra.mxu0 0.0
    %277 = vmatprep.subr.mxu0 0.0
    %278 = vmatpush1.msra.mxu0 0.0
    %279 = vmatprep.subr.mxu0 0.0
    %280 = vmatpush1.msra.mxu0 0.0
    %281 = vmatprep.subr.mxu0 0.0
    %282 = vmatpush1.msra.mxu0 0.0
    %283 = vmatprep.subr.mxu0 0.0
    %284 = vmatpush1.msra.mxu0 0.0
    %285 = vmatprep.subr.mxu0 0.0
    %286 = vmatpush1.msra.mxu0 0.0
    %287 = vmatprep.mubr.f32.mxu0 0.0
    %288 = vmatmul.mubr.f32.gmra.mrb[0].mxu0 %v221
    %v289 = vpop.f32.mrb[0].mxu0
    %v290 = vadd.f32 0.0, %v289
    %v291 = vpop.f32.mrb[0].mxu0
    %292 = vdwg.mxu0
    %v294 = vrot.slane %v290, 2
    %v296 = vadd.f32 %v124, %v294
    %v297 = vtanh.pop %v296
    %vm298 = vcmask 261126
    %299 = vst.msk [vmem:[#allocation2] sm:$0xc0] %vm298, %v296
    %v301 = vrot.slane %v297, 6
    %v302 = vsel %vm139, %v301, 0
    %304 = vmatprep.subr.mxu0 0.0
    %305 = vmatpush1.msra.mxu0 %v32
    %306 = vmatprep.subr.mxu0 0.0
    %307 = vmatpush1.msra.mxu0 %v33
    %308 = vmatprep.subr.mxu0 0.0
    %309 = vmatpush1.msra.mxu0 %v34
    %310 = vmatprep.subr.mxu0 0.0
    %311 = vmatpush1.msra.mxu0 %v35
    %312 = vmatprep.subr.mxu0 0.0
    %313 = vmatpush1.msra.mxu0 0.0
    %314 = vmatprep.subr.mxu0 0.0
    %315 = vmatpush1.msra.mxu0 0.0
    %316 = vmatprep.subr.mxu0 0.0
    %317 = vmatpush1.msra.mxu0 0.0
    %318 = vmatprep.subr.mxu0 0.0
    %319 = vmatpush1.msra.mxu0 0.0
    %320 = vmatprep.subr.mxu0 0.0
    %321 = vmatpush1.msra.mxu0 0.0
    %322 = vmatprep.subr.mxu0 0.0
    %323 = vmatpush1.msra.mxu0 0.0
    %324 = vmatprep.subr.mxu0 0.0
    %325 = vmatpush1.msra.mxu0 0.0
    %326 = vmatprep.subr.mxu0 0.0
    %327 = vmatpush1.msra.mxu0 0.0
    %328 = vmatprep.subr.mxu0 0.0
    %329 = vmatpush1.msra.mxu0 0.0
    %330 = vmatprep.subr.mxu0 0.0
    %331 = vmatpush1.msra.mxu0 0.0
    %332 = vmatprep.subr.mxu0 0.0
    %333 = vmatpush1.msra.mxu0 0.0
    %334 = vmatprep.subr.mxu0 0.0
    %335 = vmatpush1.msra.mxu0 0.0
    %336 = vmatprep.subr.mxu0 0.0
    %337 = vmatpush1.msra.mxu0 0.0
    %338 = vmatprep.subr.mxu0 0.0
    %339 = vmatpush1.msra.mxu0 0.0
    %340 = vmatprep.subr.mxu0 0.0
    %341 = vmatpush1.msra.mxu0 0.0
    %342 = vmatprep.subr.mxu0 0.0
    %343 = vmatpush1.msra.mxu0 0.0
    %344 = vmatprep.subr.mxu0 0.0
    %345 = vmatpush1.msra.mxu0 0.0
    %346 = vmatprep.subr.mxu0 0.0
    %347 = vmatpush1.msra.mxu0 0.0
    %348 = vmatprep.subr.mxu0 0.0
    %349 = vmatpush1.msra.mxu0 0.0
    %350 = vmatprep.subr.mxu0 0.0
    %351 = vmatpush1.msra.mxu0 0.0
    %352 = vmatprep.subr.mxu0 0.0
    %353 = vmatpush1.msra.mxu0 0.0
    %354 = vmatprep.subr.mxu0 0.0
    %355 = vmatpush1.msra.mxu0 0.0
    %356 = vmatprep.subr.mxu0 0.0
    %357 = vmatpush1.msra.mxu0 0.0
    %358 = vmatprep.subr.mxu0 0.0
    %359 = vmatpush1.msra.mxu0 0.0
    %360 = vmatprep.subr.mxu0 0.0
    %361 = vmatpush1.msra.mxu0 0.0
    %362 = vmatprep.subr.mxu0 0.0
    %363 = vmatpush1.msra.mxu0 0.0
    %364 = vmatprep.subr.mxu0 0.0
    %365 = vmatpush1.msra.mxu0 0.0
    %366 = vmatprep.subr.mxu0 0.0
    %367 = vmatpush1.msra.mxu0 0.0
    %368 = vmatprep.mubr.f32.mxu0 0.0
    %369 = vmatmul.mubr.f32.gmra.mrb[0].mxu0 %v302
    %v370 = vpop.f32.mrb[0].mxu0
    %v371 = vadd.f32 0.0, %v370
    %v372 = vpop.f32.mrb[0].mxu0
    %373 = vdwg.mxu0
    %v374 = vadd.f32 %v129, %v371
    %v376 = vrot.slane %v215, 4
    %v378 = vadd.f32 %v374, %v376
    %v379 = vtanh.pop %v378
    %380 = vst.msk [vmem:[#allocation2 + $0x8] sm:$0x3] %vm132, %v374
    %v382 = vsel %vm139, %v379, 0
    %384 = vmatprep.subr.mxu0 0.0
    %385 = vmatpush1.msra.mxu0 %v32
    %386 = vmatprep.subr.mxu0 0.0
    %387 = vmatpush1.msra.mxu0 %v33
    %388 = vmatprep.subr.mxu0 0.0
    %389 = vmatpush1.msra.mxu0 %v34
    %390 = vmatprep.subr.mxu0 0.0
    %391 = vmatpush1.msra.mxu0 %v35
    %392 = vmatprep.subr.mxu0 0.0
    %393 = vmatpush1.msra.mxu0 0.0
    %394 = vmatprep.subr.mxu0 0.0
    %395 = vmatpush1.msra.mxu0 0.0
    %396 = vmatprep.subr.mxu0 0.0
    %397 = vmatpush1.msra.mxu0 0.0
    %398 = vmatprep.subr.mxu0 0.0
    %399 = vmatpush1.msra.mxu0 0.0
    %400 = vmatprep.subr.mxu0 0.0
    %401 = vmatpush1.msra.mxu0 0.0
    %402 = vmatprep.subr.mxu0 0.0
    %403 = vmatpush1.msra.mxu0 0.0
    %404 = vmatprep.subr.mxu0 0.0
    %405 = vmatpush1.msra.mxu0 0.0
    %406 = vmatprep.subr.mxu0 0.0
    %407 = vmatpush1.msra.mxu0 0.0
    %408 = vmatprep.subr.mxu0 0.0
    %409 = vmatpush1.msra.mxu0 0.0
    %410 = vmatprep.subr.mxu0 0.0
    %411 = vmatpush1.msra.mxu0 0.0
    %412 = vmatprep.subr.mxu0 0.0
    %413 = vmatpush1.msra.mxu0 0.0
    %414 = vmatprep.subr.mxu0 0.0
    %415 = vmatpush1.msra.mxu0 0.0
    %416 = vmatprep.subr.mxu0 0.0
    %417 = vmatpush1.msra.mxu0 0.0
    %418 = vmatprep.subr.mxu0 0.0
    %419 = vmatpush1.msra.mxu0 0.0
    %420 = vmatprep.subr.mxu0 0.0
    %421 = vmatpush1.msra.mxu0 0.0
    %422 = vmatprep.subr.mxu0 0.0
    %423 = vmatpush1.msra.mxu0 0.0
    %424 = vmatprep.subr.mxu0 0.0
    %425 = vmatpush1.msra.mxu0 0.0
    %426 = vmatprep.subr.mxu0 0.0
    %427 = vmatpush1.msra.mxu0 0.0
    %428 = vmatprep.subr.mxu0 0.0
    %429 = vmatpush1.msra.mxu0 0.0
    %430 = vmatprep.subr.mxu0 0.0
    %431 = vmatpush1.msra.mxu0 0.0
    %432 = vmatprep.subr.mxu0 0.0
    %433 = vmatpush1.msra.mxu0 0.0
    %434 = vmatprep.subr.mxu0 0.0
    %435 = vmatpush1.msra.mxu0 0.0
    %436 = vmatprep.subr.mxu0 0.0
    %437 = vmatpush1.msra.mxu0 0.0
    %438 = vmatprep.subr.mxu0 0.0
    %439 = vmatpush1.msra.mxu0 0.0
    %440 = vmatprep.subr.mxu0 0.0
    %441 = vmatpush1.msra.mxu0 0.0
    %442 = vmatprep.subr.mxu0 0.0
    %443 = vmatpush1.msra.mxu0 0.0
    %444 = vmatprep.subr.mxu0 0.0
    %445 = vmatpush1.msra.mxu0 0.0
    %446 = vmatprep.subr.mxu0 0.0
    %447 = vmatpush1.msra.mxu0 0.0
    %448 = vmatprep.mubr.f32.mxu0 0.0
    %449 = vmatmul.mubr.f32.gmra.mrb[0].mxu0 %v382
    %v450 = vpop.f32.mrb[0].mxu0
    %v451 = vadd.f32 0.0, %v450
    %v452 = vpop.f32.mrb[0].mxu0
    %453 = vdwg.mxu0
    %v455 = vrot.slane %v451, 6
    %v457 = vadd.f32 %v129, %v455
    %v458 = vtanh.pop %v457
    %459 = vst.msk [vmem:[#allocation2 + $0x8] sm:$0xc] %vm135, %v457
    %v461 = vrot.slane %v458, 2
    %v462 = vsel %vm139, %v461, 0
    %464 = vmatprep.subr.mxu0 0.0
    %465 = vmatpush1.msra.mxu0 %v32
    %466 = vmatprep.subr.mxu0 0.0
    %467 = vmatpush1.msra.mxu0 %v33
    %468 = vmatprep.subr.mxu0 0.0
    %469 = vmatpush1.msra.mxu0 %v34
    %470 = vmatprep.subr.mxu0 0.0
    %471 = vmatpush1.msra.mxu0 %v35
    %472 = vmatprep.subr.mxu0 0.0
    %473 = vmatpush1.msra.mxu0 0.0
    %474 = vmatprep.subr.mxu0 0.0
    %475 = vmatpush1.msra.mxu0 0.0
    %476 = vmatprep.subr.mxu0 0.0
    %477 = vmatpush1.msra.mxu0 0.0
    %478 = vmatprep.subr.mxu0 0.0
    %479 = vmatpush1.msra.mxu0 0.0
    %480 = vmatprep.subr.mxu0 0.0
    %481 = vmatpush1.msra.mxu0 0.0
    %482 = vmatprep.subr.mxu0 0.0
    %483 = vmatpush1.msra.mxu0 0.0
    %484 = vmatprep.subr.mxu0 0.0
    %485 = vmatpush1.msra.mxu0 0.0
    %486 = vmatprep.subr.mxu0 0.0
    %487 = vmatpush1.msra.mxu0 0.0
    %488 = vmatprep.subr.mxu0 0.0
    %489 = vmatpush1.msra.mxu0 0.0
    %490 = vmatprep.subr.mxu0 0.0
    %491 = vmatpush1.msra.mxu0 0.0
    %492 = vmatprep.subr.mxu0 0.0
    %493 = vmatpush1.msra.mxu0 0.0
    %494 = vmatprep.subr.mxu0 0.0
    %495 = vmatpush1.msra.mxu0 0.0
    %496 = vmatprep.subr.mxu0 0.0
    %497 = vmatpush1.msra.mxu0 0.0
    %498 = vmatprep.subr.mxu0 0.0
    %499 = vmatpush1.msra.mxu0 0.0
    %500 = vmatprep.subr.mxu0 0.0
    %501 = vmatpush1.msra.mxu0 0.0
    %502 = vmatprep.subr.mxu0 0.0
    %503 = vmatpush1.msra.mxu0 0.0
    %504 = vmatprep.subr.mxu0 0.0
    %505 = vmatpush1.msra.mxu0 0.0
    %506 = vmatprep.subr.mxu0 0.0
    %507 = vmatpush1.msra.mxu0 0.0
    %508 = vmatprep.subr.mxu0 0.0
    %509 = vmatpush1.msra.mxu0 0.0
    %510 = vmatprep.subr.mxu0 0.0
    %511 = vmatpush1.msra.mxu0 0.0
    %512 = vmatprep.subr.mxu0 0.0
    %513 = vmatpush1.msra.mxu0 0.0
    %514 = vmatprep.subr.mxu0 0.0
    %515 = vmatpush1.msra.mxu0 0.0
    %516 = vmatprep.subr.mxu0 0.0
    %517 = vmatpush1.msra.mxu0 0.0
    %518 = vmatprep.subr.mxu0 0.0
    %519 = vmatpush1.msra.mxu0 0.0
    %520 = vmatprep.subr.mxu0 0.0
    %521 = vmatpush1.msra.mxu0 0.0
    %522 = vmatprep.subr.mxu0 0.0
    %523 = vmatpush1.msra.mxu0 0.0
    %524 = vmatprep.subr.mxu0 0.0
    %525 = vmatpush1.msra.mxu0 0.0
    %526 = vmatprep.subr.mxu0 0.0
    %527 = vmatpush1.msra.mxu0 0.0
    %528 = vmatprep.mubr.f32.mxu0 0.0
    %529 = vmatmul.mubr.f32.gmra.mrb[0].mxu0 %v462
    %v530 = vpop.f32.mrb[0].mxu0
    %v531 = vadd.f32 0.0, %v530
    %v532 = vpop.f32.mrb[0].mxu0
    %533 = vdwg.mxu0
    %v535 = vrot.slane %v531, 4
    %v537 = vadd.f32 %v129, %v535
    %v539 = vrot.slane %v124, 4
    %v541 = vadd.f32 %v537, %v539
    %v542 = vtanh.pop %v541
    %543 = vst.msk [vmem:[#allocation2 + $0x8] sm:$0x30] %vm217, %v537
    %v545 = vrot.slane %v542, 4
    %v546 = vsel %vm139, %v545, 0
    %548 = vmatprep.subr.mxu0 0.0
    %549 = vmatpush1.msra.mxu0 %v32
    %550 = vmatprep.subr.mxu0 0.0
    %551 = vmatpush1.msra.mxu0 %v33
    %552 = vmatprep.subr.mxu0 0.0
    %553 = vmatpush1.msra.mxu0 %v34
    %554 = vmatprep.subr.mxu0 0.0
    %555 = vmatpush1.msra.mxu0 %v35
    %556 = vmatprep.subr.mxu0 0.0
    %557 = vmatpush1.msra.mxu0 0.0
    %558 = vmatprep.subr.mxu0 0.0
    %559 = vmatpush1.msra.mxu0 0.0
    %560 = vmatprep.subr.mxu0 0.0
    %561 = vmatpush1.msra.mxu0 0.0
    %562 = vmatprep.subr.mxu0 0.0
    %563 = vmatpush1.msra.mxu0 0.0
    %564 = vmatprep.subr.mxu0 0.0
    %565 = vmatpush1.msra.mxu0 0.0
    %566 = vmatprep.subr.mxu0 0.0
    %567 = vmatpush1.msra.mxu0 0.0
    %568 = vmatprep.subr.mxu0 0.0
    %569 = vmatpush1.msra.mxu0 0.0
    %570 = vmatprep.subr.mxu0 0.0
    %571 = vmatpush1.msra.mxu0 0.0
    %572 = vmatprep.subr.mxu0 0.0
    %573 = vmatpush1.msra.mxu0 0.0
    %574 = vmatprep.subr.mxu0 0.0
    %575 = vmatpush1.msra.mxu0 0.0
    %576 = vmatprep.subr.mxu0 0.0
    %577 = vmatpush1.msra.mxu0 0.0
    %578 = vmatprep.subr.mxu0 0.0
    %579 = vmatpush1.msra.mxu0 0.0
    %580 = vmatprep.subr.mxu0 0.0
    %581 = vmatpush1.msra.mxu0 0.0
    %582 = vmatprep.subr.mxu0 0.0
    %583 = vmatpush1.msra.mxu0 0.0
    %584 = vmatprep.subr.mxu0 0.0
    %585 = vmatpush1.msra.mxu0 0.0
    %586 = vmatprep.subr.mxu0 0.0
    %587 = vmatpush1.msra.mxu0 0.0
    %588 = vmatprep.subr.mxu0 0.0
    %589 = vmatpush1.msra.mxu0 0.0
    %590 = vmatprep.subr.mxu0 0.0
    %591 = vmatpush1.msra.mxu0 0.0
    %592 = vmatprep.subr.mxu0 0.0
    %593 = vmatpush1.msra.mxu0 0.0
    %594 = vmatprep.subr.mxu0 0.0
    %595 = vmatpush1.msra.mxu0 0.0
    %596 = vmatprep.subr.mxu0 0.0
    %597 = vmatpush1.msra.mxu0 0.0
    %598 = vmatprep.subr.mxu0 0.0
    %599 = vmatpush1.msra.mxu0 0.0
    %600 = vmatprep.subr.mxu0 0.0
    %601 = vmatpush1.msra.mxu0 0.0
    %602 = vmatprep.subr.mxu0 0.0
    %603 = vmatpush1.msra.mxu0 0.0
    %604 = vmatprep.subr.mxu0 0.0
    %605 = vmatpush1.msra.mxu0 0.0
    %606 = vmatprep.subr.mxu0 0.0
    %607 = vmatpush1.msra.mxu0 0.0
    %608 = vmatprep.subr.mxu0 0.0
    %609 = vmatpush1.msra.mxu0 0.0
    %610 = vmatprep.subr.mxu0 0.0
    %611 = vmatpush1.msra.mxu0 0.0
    %612 = vmatprep.mubr.f32.mxu0 0.0
    %613 = vmatmul.mubr.f32.gmra.mrb[0].mxu0 %v546
    %v614 = vpop.f32.mrb[0].mxu0
    %v615 = vadd.f32 0.0, %v614
    %v616 = vpop.f32.mrb[0].mxu0
    %617 = vdwg.mxu0
    %v619 = vrot.slane %v615, 2
    %v621 = vadd.f32 %v129, %v619
    %622 = vst.msk [vmem:[#allocation2 + $0x8] sm:$0xc0] %vm298, %v621
    %v623 = vld [vmem:[#allocation2] sm:$0xff]
    %v624 = vld [vmem:[#allocation2 + $0x8] sm:$0xff]
    %v625 = vld [vmem:[%s4] sm:$0x1]
    %v627 = vlaneseq
    %v628 = vshrl.u32 %v627, 7
    %v629 = vsub.s32 0, %v628
    %v630 = vrot.slane %v625, %v629
    %v632 = vmul.f32 %v623, %v630
    %v633 = vmul.f32 %v624, %v630
    %v634 = vsel %vm139, %v632, 0.0
    %635 = vadd.xlane.f32.xlu0 %v634
    %v636 = vpop.xlane.xlu0 %635
    %v637 = vsel %vm139, %v633, 0.0
    %638 = vadd.xlane.f32.xlu0 %v637
    %v639 = vpop.xlane.xlu0 %638
    %v640 = vld [vmem:[#allocation4] sm:$0x1]
    %v642 = vlaneseq
    %v643 = vshrl.u32 %v642, 7
    %v644 = vsub.s32 0, %v643
    %v645 = vrot.slane %v640, %v644
    %v647 = vadd.f32 %v636, %v645
    %v648 = vadd.f32 %v639, %v645
    %vm649 = vcmask 7168
    %v650 = vsel %vm649, %v647, -inf
    %v651 = vrot.slane %v650, 4
    %v652 = vmax.f32 %v650, %v651
    %v653 = vrot.slane %v652, 2
    %v654 = vmax.f32 %v652, %v653
    %v655 = vrot.slane %v654, 1
    %v656 = vmax.f32 %v654, %v655
    %v657 = vsub.f32 %v647, %v656
    %v658 = vmul.f32 %v657, 1.442695
    %v659 = vpow.pop %v658
    %v660 = vsel %vm649, %v659, 0.0
    %v661 = vrot.slane %v660, 4
    %v662 = vadd.f32 %v660, %v661
    %v663 = vrot.slane %v662, 2
    %v664 = vadd.f32 %v662, %v663
    %v665 = vrot.slane %v664, 1
    %v666 = vadd.f32 %v664, %v665
    %v667 = vrcp.pop %v666
    %v668 = vmul.f32 %v659, %v667
    %670 = vset.pattern.permute.xlu0 0
    %671 = vperm.xlu0 %670, %v668
    %v672 = vpop.permute.xlu0 %671
    %v674 = vmul.f32 %v623, %v672
    %vm675 = vcmask 253952
    %676 = vst.msk [vmem:[#allocation3] sm:$0x1] %vm675, %v674
    %v679 = vunpack.c.l.s4 1983009808
    %v680 = vunpack.c.0.s8 %v679
    %v681 = vlaneseq
    %v682 = vshrl.u32 %v681, 7
    %v683 = vsub.s32 %v680, %v682
    %v684 = vrot.slane %v674, %v683
    %v685 = vrot.slane %v684, 7
    %v686 = vrot.slane %v685, 2
    %687 = vrot.lane.b32.xlu0 %v686, 32
    %v688 = vpop.permute.xlu0 %687
    %vm690 = vcmask 516352
    %691 = vst.msk [vmem:[#allocation3] sm:$0x1] %vm690, %v688
    %v692 = vcombine.high %v684, %v684
    %693 = vrot.lane.b32.xlu0 %v692, 64
    %v694 = vpop.permute.xlu0 %693
    %vm696 = vcmask 778752
    %697 = vst.msk [vmem:[#allocation3] sm:$0x1] %vm696, %v694
    %v698 = vrot.slane %v692, 7
    %v699 = vrot.slane %v698, 2
    %700 = vrot.lane.b32.xlu0 %v699, 96
    %v701 = vpop.permute.xlu0 %700
    %vm703 = vcmask 1041152
    %704 = vst.msk [vmem:[#allocation3] sm:$0x1] %vm703, %v701
    %v705 = vcombine.high %v674, %v674
    %v707 = vunpack.c.l.s4 1983009808
    %v708 = vunpack.c.0.s8 %v707
    %v709 = vlaneseq
    %v710 = vshrl.u32 %v709, 7
    %v711 = vsub.s32 %v708, %v710
    %v712 = vrot.slane %v705, %v711
    %714 = vst.msk [vmem:[#allocation3 + $0x2] sm:$0x1] %vm675, %v712
    %v715 = vrot.slane %v712, 7
    %v716 = vrot.slane %v715, 2
    %717 = vrot.lane.b32.xlu0 %v716, 32
    %v718 = vpop.permute.xlu0 %717
    %720 = vst.msk [vmem:[#allocation3 + $0x2] sm:$0x1] %vm690, %v718
    %v721 = vcombine.high %v712, %v712
    %722 = vrot.lane.b32.xlu0 %v721, 64
    %v723 = vpop.permute.xlu0 %722
    %725 = vst.msk [vmem:[#allocation3 + $0x2] sm:$0x1] %vm696, %v723
    %v726 = vrot.slane %v721, 7
    %v727 = vrot.slane %v726, 2
    %728 = vrot.lane.b32.xlu0 %v727, 96
    %v729 = vpop.permute.xlu0 %728
    %731 = vst.msk [vmem:[#allocation3 + $0x2] sm:$0x1] %vm703, %v729
    %v732 = vsel %vm649, %v648, -inf
    %v733 = vrot.slane %v732, 4
    %v734 = vmax.f32 %v732, %v733
    %v735 = vrot.slane %v734, 2
    %v736 = vmax.f32 %v734, %v735
    %v737 = vrot.slane %v736, 1
    %v738 = vmax.f32 %v736, %v737
    %v739 = vsub.f32 %v648, %v738
    %v740 = vmul.f32 %v739, 1.442695
    %v741 = vpow.pop %v740
    %v742 = vsel %vm649, %v741, 0.0
    %v743 = vrot.slane %v742, 4
    %v744 = vadd.f32 %v742, %v743
    %v745 = vrot.slane %v744, 2
    %v746 = vadd.f32 %v744, %v745
    %v747 = vrot.slane %v746, 1
    %v748 = vadd.f32 %v746, %v747
    %v749 = vrcp.pop %v748
    %v750 = vmul.f32 %v741, %v749
    %752 = vset.pattern.permute.xlu0 0
    %753 = vperm.xlu0 %752, %v750
    %v754 = vpop.permute.xlu0 %753
    %v756 = vmul.f32 %v624, %v754
    %757 = vst.msk [vmem:[#allocation3 + $0x1] sm:$0x1] %vm675, %v756
    %v760 = vunpack.c.l.s4 1983009808
    %v761 = vunpack.c.0.s8 %v760
    %v762 = vlaneseq
    %v763 = vshrl.u32 %v762, 7
    %v764 = vsub.s32 %v761, %v763
    %v765 = vrot.slane %v756, %v764
    %v766 = vrot.slane %v765, 7
    %v767 = vrot.slane %v766, 2
    %768 = vrot.lane.b32.xlu0 %v767, 32
    %v769 = vpop.permute.xlu0 %768
    %771 = vst.msk [vmem:[#allocation3 + $0x1] sm:$0x1] %vm690, %v769
    %v772 = vcombine.high %v765, %v765
    %773 = vrot.lane.b32.xlu0 %v772, 64
    %v774 = vpop.permute.xlu0 %773
    %776 = vst.msk [vmem:[#allocation3 + $0x1] sm:$0x1] %vm696, %v774
    %v777 = vrot.slane %v772, 7
    %v778 = vrot.slane %v777, 2
    %779 = vrot.lane.b32.xlu0 %v778, 96
    %v780 = vpop.permute.xlu0 %779
    %782 = vst.msk [vmem:[#allocation3 + $0x1] sm:$0x1] %vm703, %v780
    %v783 = vcombine.high %v756, %v756
    %v785 = vunpack.c.l.s4 1983009808
    %v786 = vunpack.c.0.s8 %v785
    %v787 = vlaneseq
    %v788 = vshrl.u32 %v787, 7
    %v789 = vsub.s32 %v786, %v788
    %v790 = vrot.slane %v783, %v789
    %792 = vst.msk [vmem:[#allocation3 + $0x3] sm:$0x1] %vm675, %v790
    %v793 = vrot.slane %v790, 7
    %v794 = vrot.slane %v793, 2
    %795 = vrot.lane.b32.xlu0 %v794, 32
    %v796 = vpop.permute.xlu0 %795
    %798 = vst.msk [vmem:[#allocation3 + $0x3] sm:$0x1] %vm690, %v796
    %v799 = vcombine.high %v790, %v790
    %800 = vrot.lane.b32.xlu0 %v799, 64
    %v801 = vpop.permute.xlu0 %800
    %803 = vst.msk [vmem:[#allocation3 + $0x3] sm:$0x1] %vm696, %v801
    %v804 = vrot.slane %v799, 7
    %v805 = vrot.slane %v804, 2
    %806 = vrot.lane.b32.xlu0 %v805, 96
    %v807 = vpop.permute.xlu0 %806
    %809 = vst.msk [vmem:[#allocation3 + $0x3] sm:$0x1] %vm703, %v807
    %v810 = vld [vmem:[#allocation3] sm:$0xf]
    %v811 = vld [vmem:[%s6] sm:$0xff]
    %v812 = vld [vmem:[%s7] sm:$0x1]
    %v814 = vlaneseq
    %v815 = vshrl.u32 %v814, 7
    %v816 = vsub.s32 0, %v815
    %v817 = vrot.slane %v812, %v816
    %v821 = vunpack.c.l.s4 1983009808
    %v822 = vunpack.c.0.s8 %v821
    %v823 = vlaneseq
    %v824 = vshrl.u32 %v823, 7
    %v825 = vsub.s32 %v822, %v824
    %v826 = vrot.slane %v810, %v825
    %v827 = vcombine.high %v826, %v826
    %v831 = vcombine.high %v811, %v811
    %833 = vmatprep.subr.mxu0 %v831
    %834 = vmatpush1.xpose.msra.mxu0 %v811
    %835 = vmatprep.subr.mxu0 0.0
    %836 = vmatpush1.xpose.msra.mxu0 0.0
    %837 = vmatprep.subr.mxu0 0.0
    %838 = vmatpush1.xpose.msra.mxu0 0.0
    %839 = vmatprep.subr.mxu0 0.0
    %840 = vmatpush1.xpose.msra.mxu0 0.0
    %841 = vmatprep.subr.mxu0 0.0
    %842 = vmatpush1.xpose.msra.mxu0 0.0
    %843 = vmatprep.subr.mxu0 0.0
    %844 = vmatpush1.xpose.msra.mxu0 0.0
    %845 = vmatprep.subr.mxu0 0.0
    %846 = vmatpush1.xpose.msra.mxu0 0.0
    %847 = vmatprep.subr.mxu0 0.0
    %848 = vmatpush1.xpose.msra.mxu0 0.0
    %849 = vmatprep.subr.mxu0 0.0
    %850 = vmatpush1.xpose.msra.mxu0 0.0
    %851 = vmatprep.subr.mxu0 0.0
    %852 = vmatpush1.xpose.msra.mxu0 0.0
    %853 = vmatprep.subr.mxu0 0.0
    %854 = vmatpush1.xpose.msra.mxu0 0.0
    %855 = vmatprep.subr.mxu0 0.0
    %856 = vmatpush1.xpose.msra.mxu0 0.0
    %857 = vmatprep.subr.mxu0 0.0
    %858 = vmatpush1.xpose.msra.mxu0 0.0
    %859 = vmatprep.subr.mxu0 0.0
    %860 = vmatpush1.xpose.msra.mxu0 0.0
    %861 = vmatprep.subr.mxu0 0.0
    %862 = vmatpush1.xpose.msra.mxu0 0.0
    %863 = vmatprep.subr.mxu0 0.0
    %864 = vmatpush1.xpose.msra.mxu0 0.0
    %865 = vmatprep.subr.mxu0 0.0
    %866 = vmatpush1.xpose.msra.mxu0 0.0
    %867 = vmatprep.subr.mxu0 0.0
    %868 = vmatpush1.xpose.msra.mxu0 0.0
    %869 = vmatprep.subr.mxu0 0.0
    %870 = vmatpush1.xpose.msra.mxu0 0.0
    %871 = vmatprep.subr.mxu0 0.0
    %872 = vmatpush1.xpose.msra.mxu0 0.0
    %873 = vmatprep.subr.mxu0 0.0
    %874 = vmatpush1.xpose.msra.mxu0 0.0
    %875 = vmatprep.subr.mxu0 0.0
    %876 = vmatpush1.xpose.msra.mxu0 0.0
    %877 = vmatprep.subr.mxu0 0.0
    %878 = vmatpush1.xpose.msra.mxu0 0.0
    %879 = vmatprep.subr.mxu0 0.0
    %880 = vmatpush1.xpose.msra.mxu0 0.0
    %881 = vmatprep.subr.mxu0 0.0
    %882 = vmatpush1.xpose.msra.mxu0 0.0
    %883 = vmatprep.subr.mxu0 0.0
    %884 = vmatpush1.xpose.msra.mxu0 0.0
    %885 = vmatprep.subr.mxu0 0.0
    %886 = vmatpush1.xpose.msra.mxu0 0.0
    %887 = vmatprep.subr.mxu0 0.0
    %888 = vmatpush1.xpose.msra.mxu0 0.0
    %889 = vmatprep.subr.mxu0 0.0
    %890 = vmatpush1.xpose.msra.mxu0 0.0
    %891 = vmatprep.subr.mxu0 0.0
    %892 = vmatpush1.xpose.msra.mxu0 0.0
    %893 = vmatprep.subr.mxu0 0.0
    %894 = vmatpush1.xpose.msra.mxu0 0.0
    %895 = vmatprep.subr.mxu0 0.0
    %896 = vmatpush1.xpose.msra.mxu0 0.0
    %897 = vmatprep.mubr.f32.mxu0 %v827
    %898 = vmatmul.mubr.f32.gmra.mrb[0].mxu0 %v826
    %v899 = vpop.f32.mrb[0].mxu0
    %v900 = vadd.f32 %v817, %v899
    %v901 = vpop.f32.mrb[0].mxu0
    %902 = vdwg.mxu0
    %vm903 = vcmask 25600
    %904 = vst.msk [vmem:[#allocation5] sm:$0x3] %vm903, %v900
    // Predicated region
    $region34: #{rnn_attention_forward.1} parent=1 // pred_check
      _
    $region35: #{rnn_attention_forward.1} parent=1 // pred_check_branch
      %906 = sbr.rel (0) target = $region37
    $region36: #{rnn_attention_forward.1} parent=1 // pred_region
      %s908 = ssub.s32 32, 32
      %909 = vsyncadd [#allocation6], %s908
      %s911 = sshll.u32 [#allocation5], 4
      %s912 = int_to_ptr.vmem [resolvable:$true] %s911
      %914 = dma.vmem_to_hbm [thread:$0]  %s912, 32, %s8, [#allocation6]
    $region37: #{rnn_attention_forward.1} parent=1 // pred_fallthru
      _
    // Predicated region
    $region38: #{rnn_attention_forward.1} parent=1 // pred_check
      _
    $region39: #{rnn_attention_forward.1} parent=1 // pred_check_branch
      %916 = sbr.rel (0) target = $region41
    $region40: #{rnn_attention_forward.1} parent=1 // pred_region
      %917 = dma.done [#allocation6], 32
    $region41: #{rnn_attention_forward.1} parent=1 // pred_fallthru
      _
    %918 = vsyncpa [#allocation6], 1

</llo_original>
